<compile_context>
chip_gen: v5e
topology: v5e:2x2
jax: 0.10.0
libtpu: 0.0.40
codegen_flags: <defaults>
</compile_context>

<pallas_src>
import functools

import jax
import jax.numpy as jnp
from jax.experimental import pallas as pl
from jax.experimental.pallas import tpu as pltpu


def _round_up(v, m):
    return ((v + m - 1) // m) * m


# ---------------------------------------------------------------------------
# Fused kernel: im2row -> one big matmul (all Ks) -> bias/ReLU/mask -> max over
# time -> FC matmul.  Single grid step; everything lives in VMEM.
# ---------------------------------------------------------------------------
def _fused_kernel(Ks, Co, B, L,
                  x_ref, wbig_ref, ball_ref, wfc_ref, bfc_ref,
                  o_ref, xpad_ref, xwin_ref):
    # x_ref:    (B*L, D)        flattened batch of embeddings
    # wbig_ref: (Kmax*D, Gpad)  packed conv weights (zero-padded), Gpad = 128k
    # ball_ref: (1, Gpad)       packed conv biases
    # wfc_ref:  (Gpad, C)       FC weight (rows >= len(Ks)*Co are zero)
    # bfc_ref:  (1, C)          FC bias
    # o_ref:    (B, C)          logits
    # xpad_ref: (B*L + pad, D)  VMEM scratch (zero-padded tail)
    # xwin_ref: (B*L, Kmax*D)   VMEM scratch (im2row matrix)
    BL, D = x_ref.shape
    Gpad = wbig_ref.shape[-1]
    Kmax = max(Ks)
    pad_rows = xpad_ref.shape[0] - BL

    # Zero the overhang rows, then drop the whole (flattened) batch into VMEM.
    xpad_ref[pl.ds(BL, pad_rows), :] = jnp.zeros((pad_rows, D), jnp.float32)
    xpad_ref[pl.ds(0, BL), :] = x_ref[...]

    # im2row: xwin[r, k*D + d] = x_row[r + k, d]  (built once; contraction Kmax*D)
    for k in range(Kmax):                                   # static unroll
        xwin_ref[:, pl.ds(k * D, D)] = xpad_ref[pl.ds(k, BL), :]

    # One MXU matmul computes every kernel size / filter / window position.
    # (bf16 inputs with f32 accumulation are a drop-in on v6e/v7x at realistic
    #  sizes; kept f32 here for exactness at these tiny shapes.)
    acc = jnp.dot(xwin_ref[...], wbig_ref[...],
                  preferred_element_type=jnp.float32)       # (B*L, Gpad)
    acc = jnp.maximum(acc + ball_ref[...], 0.0)             # bias + ReLU (f32)

    # Mask window positions torch never computes (t >= L - K + 1) and the
    # zero-padded lanes.  Zero is exact post-ReLU (pooled max is always >= 0).
    t_idx = jax.lax.broadcasted_iota(jnp.int32, (L, Gpad), 0)
    lane = jax.lax.broadcasted_iota(jnp.int32, (L, Gpad), 1)
    limit = jnp.zeros((L, Gpad), jnp.int32)
    for gi, K in enumerate(Ks):                              # static unroll
        in_grp = (lane >= gi * Co) & (lane < (gi + 1) * Co)
        limit = jnp.where(in_grp, L - K + 1, limit)
    valid = (t_idx < limit).astype(jnp.float32)              # (L, Gpad)

    acc = acc.reshape(B, L, Gpad) * valid[None, :, :]
    pooled = jnp.max(acc, axis=1)                            # (B, Gpad) lane-dense

    # TODO(synk): for very long sequences (L >> 128) tile L with K-1 overlap and
    # carry the running max in scratch instead of holding all of L in VMEM.
    # Final fully-connected layer (dropout is identity at inference).
    o_ref[...] = (jnp.dot(pooled, wfc_ref[...],
                          preferred_element_type=jnp.float32)
                  + bfc_ref[...])


def _fused_forward(x2, wbig, ball, wfc, bfc, Ks, Co, B, L):
    BL, D = x2.shape
    C = wfc.shape[-1]
    Kmax = max(Ks)
    pad_rows = max(8, _round_up(max(Kmax - 1, 1), 8))
    kern = functools.partial(_fused_kernel, tuple(Ks), Co, B, L)
    return pl.pallas_call(
        kern,
        out_shape=jax.ShapeDtypeStruct((B, C), jnp.float32),
        grid=(1,),
        in_specs=[
            pl.BlockSpec((BL, D), lambda i: (0, 0)),
            pl.BlockSpec(wbig.shape, lambda i: (0, 0)),
            pl.BlockSpec(ball.shape, lambda i: (0, 0)),
            pl.BlockSpec(wfc.shape, lambda i: (0, 0)),
            pl.BlockSpec(bfc.shape, lambda i: (0, 0)),
        ],
        out_specs=pl.BlockSpec((B, C), lambda i: (0, 0)),
        scratch_shapes=[
            pltpu.VMEM((BL + pad_rows, D), jnp.float32),     # xpad
            pltpu.VMEM((BL, Kmax * D), jnp.float32),         # im2row
        ],
        compiler_params=pltpu.CompilerParams(
            dimension_semantics=("arbitrary",)),
    )(x2, wbig, ball, wfc, bfc)


# ---------------------------------------------------------------------------
# Parameter init (mirrors the torch layouts) and one-time weight packing.
# ---------------------------------------------------------------------------
def init_params(key, embed_dim, kernel_num, kernel_sizes, num_class):
    params = {"Ks": tuple(kernel_sizes)}
    n_keys = 2 * len(kernel_sizes) + 2
    keys = jax.random.split(key, n_keys)
    ki = 0
    for K in kernel_sizes:
        # torch Conv2d weight is (Co, 1, K, D); stored here as (K, D, Co).
        params[f"conv{K}_w"] = 0.1 * jax.random.normal(
            keys[ki], (K, embed_dim, kernel_num), dtype=jnp.float32)
        params[f"conv{K}_b"] = 0.1 * jax.random.normal(
            keys[ki + 1], (1, kernel_num), dtype=jnp.float32)
        ki += 2
    F_in = len(kernel_sizes) * kernel_num                    # len(Ks)*Co + 0
    # torch Linear weight is (C, F); stored here as its transpose (F, C).
    params["fc_w"] = 0.1 * jax.random.normal(
        keys[ki], (F_in, num_class), dtype=jnp.float32)
    params["fc_b"] = 0.1 * jax.random.normal(
        keys[ki + 1], (1, num_class), dtype=jnp.float32)
    return params


def _pack_params(params):
    """Pack all conv weights/biases + FC weight into 128-lane-padded tensors.

    Tiny, and could be hoisted/jitted once per checkpoint in a real model.
    """
    Ks = params["Ks"]
    Co = params[f"conv{Ks[0]}_b"].shape[-1]
    D = params[f"conv{Ks[0]}_w"].shape[1]
    Kmax = max(Ks)
    G = len(Ks) * Co
    Gpad = _round_up(G, 128)
    C = params["fc_w"].shape[-1]

    wbig = jnp.zeros((Kmax * D, Gpad), jnp.float32)
    ball = jnp.zeros((1, Gpad), jnp.float32)
    for gi, K in enumerate(Ks):
        w = params[f"conv{K}_w"].astype(jnp.float32)          # (K, D, Co)
        wbig = wbig.at[:K * D, gi * Co:(gi + 1) * Co].set(w.reshape(K * D, Co))
        ball = ball.at[:, gi * Co:(gi + 1) * Co].set(
            params[f"conv{K}_b"].astype(jnp.float32))
    wfc = jnp.zeros((Gpad, C), jnp.float32).at[:G, :].set(
        params["fc_w"].astype(jnp.float32))
    bfc = params["fc_b"].astype(jnp.float32)
    return wbig, ball, wfc, bfc, Co, D


# ---------------------------------------------------------------------------
# Forward (mirrors CNN_Sent.forward, conc == 0)
# ---------------------------------------------------------------------------
def cnn_sent_forward(params, x, pos=None, conc=0):
    x = x.astype(jnp.float32)                                 # torch.FloatTensor(x)
    B, L, D = x.shape
    Ks = params["Ks"]
    assert L >= max(Ks), "sequence length must be >= max kernel size"
    # TODO(synk): conc != 0 (concat positional features before fc1) is not fused;
    # the reference fc1 is sized len(Ks)*Co + 0, i.e. the conc == 0 configuration.
    wbig, ball, wfc, bfc, Co, Dw = _pack_params(params)
    assert Dw == D
    x2 = x.reshape(B * L, D)                                  # free (row-major view)
    logit = _fused_forward(x2, wbig, ball, wfc, bfc, Ks, Co, B, L)  # (B, C)
    # torch .squeeze(1): only removes dim 1 if its size is 1.
    if logit.shape[1] == 1:
        logit = jnp.squeeze(logit, axis=1)
    return logit


# Pure-JAX reference (no Pallas) used only for a numerical smoke check.
def _reference_forward(params, x):
    x = x.astype(jnp.float32)
    feats = []
    for K in params["Ks"]:
        w = params[f"conv{K}_w"]                              # (K, D, Co)
        b = params[f"conv{K}_b"]                              # (1, Co)
        Lout = x.shape[1] - K + 1
        conv = jnp.stack(
            [jnp.einsum("bld,ldc->bc", x[:, t:t + K, :], w) for t in range(Lout)],
            axis=1) + b[:, None, :]                           # (B, Lout, Co)
        feats.append(jnp.max(jax.nn.relu(conv), axis=1))      # (B, Co)
    feat = jnp.concatenate(feats, axis=1)
    logit = feat @ params["fc_w"] + params["fc_b"]
    if logit.shape[1] == 1:
        logit = jnp.squeeze(logit, axis=1)
    return logit


if __name__ == "__main__":
    # Small, module-consistent shapes:
    #   args.embed_dim=32, args.kernel_num=8, args.kernel_sizes="3,4,5",
    #   args.numClass=4, args.conc=0, batch=2, sentence length=16.
    B, L, D = 2, 16, 32
    Co, Ks, C = 8, (3, 4, 5), 4

    key = jax.random.PRNGKey(0)
    k_params, k_x = jax.random.split(key)
    params = init_params(k_params, D, Co, Ks, C)
    x = jax.random.normal(k_x, (B, L, D), dtype=jnp.float32)

    logits = cnn_sent_forward(params, x, pos=None, conc=0)
    jax.block_until_ready(logits)
    assert logits.shape == (B, C) and logits.dtype == jnp.float32

    ref = _reference_forward(params, x)
    assert jnp.allclose(logits, ref, rtol=3e-2, atol=3e-2), (
        "max abs diff vs reference: "
        f"{float(jnp.max(jnp.abs(logits - ref)))}")
    print("KERNEL_OK")
</pallas_src>

<mosaic_0001>
module attributes {stable_mosaic.version = 11 : i64} {
  func.func @_fused_kernel(%arg0: i32, %arg1: memref<32x32xf32, #tpu.memory_space<vmem>>, %arg2: memref<160x128xf32, #tpu.memory_space<vmem>>, %arg3: memref<1x128xf32, #tpu.memory_space<vmem>>, %arg4: memref<128x4xf32, #tpu.memory_space<vmem>>, %arg5: memref<1x4xf32, #tpu.memory_space<vmem>>, %arg6: memref<2x4xf32, #tpu.memory_space<vmem>>, %arg7: memref<40x32xf32, #tpu.memory_space<vmem>>, %arg8: memref<32x160xf32, #tpu.memory_space<vmem>>) attributes {dimension_semantics = [#tpu.dimension_semantics<arbitrary>], iteration_bounds = array<i64: 1>, scalar_prefetch = 0 : i64, scratch_operands = 2 : i64, tpu.core_type = #tpu.core_type<tc>, window_params = [{pipeline_mode = #tpu.pipeline_mode<synchronous>, transform_indices = @transform_0, window_bounds = array<i64: 32, 32>}, {pipeline_mode = #tpu.pipeline_mode<synchronous>, transform_indices = @transform_1, window_bounds = array<i64: 160, 128>}, {pipeline_mode = #tpu.pipeline_mode<synchronous>, transform_indices = @transform_2, window_bounds = array<i64: 1, 128>}, {pipeline_mode = #tpu.pipeline_mode<synchronous>, transform_indices = @transform_3, window_bounds = array<i64: 128, 4>}, {pipeline_mode = #tpu.pipeline_mode<synchronous>, transform_indices = @transform_4, window_bounds = array<i64: 1, 4>}, {pipeline_mode = #tpu.pipeline_mode<synchronous>, transform_indices = @transform_5, window_bounds = array<i64: 2, 4>}]} {
    %cst = arith.constant 0.000000e+00 : f32
    %0 = vector.broadcast %cst : f32 to vector<8x32xf32>
    %c32 = arith.constant 32 : index
    %c0 = arith.constant 0 : index
    %1 = vector.load %arg7[%c32, %c0] : memref<40x32xf32, #tpu.memory_space<vmem>>, vector<8x32xf32>
    tpu.vector_store %arg7[%c32, %c0], %0 {strides = array<i32>} : memref<40x32xf32, #tpu.memory_space<vmem>>, vector<8x32xf32>,
    %c0_0 = arith.constant 0 : index
    %c0_1 = arith.constant 0 : index
    %2 = vector.load %arg1[%c0_0, %c0_1] : memref<32x32xf32, #tpu.memory_space<vmem>>, vector<32x32xf32>
    %c0_2 = arith.constant 0 : index
    %c0_3 = arith.constant 0 : index
    %3 = vector.load %arg7[%c0_2, %c0_3] : memref<40x32xf32, #tpu.memory_space<vmem>>, vector<32x32xf32>
    tpu.vector_store %arg7[%c0_2, %c0_3], %2 {strides = array<i32>} : memref<40x32xf32, #tpu.memory_space<vmem>>, vector<32x32xf32>,
    %c0_4 = arith.constant 0 : index
    %c0_5 = arith.constant 0 : index
    %4 = vector.load %arg7[%c0_4, %c0_5] : memref<40x32xf32, #tpu.memory_space<vmem>>, vector<32x32xf32>
    %c0_6 = arith.constant 0 : index
    %c0_7 = arith.constant 0 : index
    %5 = vector.load %arg8[%c0_6, %c0_7] : memref<32x160xf32, #tpu.memory_space<vmem>>, vector<32x32xf32>
    tpu.vector_store %arg8[%c0_6, %c0_7], %4 {strides = array<i32>} : memref<32x160xf32, #tpu.memory_space<vmem>>, vector<32x32xf32>,
    %c1 = arith.constant 1 : index
    %c0_8 = arith.constant 0 : index
    %6 = vector.load %arg7[%c1, %c0_8] : memref<40x32xf32, #tpu.memory_space<vmem>>, vector<32x32xf32>
    %c0_9 = arith.constant 0 : index
    %c32_10 = arith.constant 32 : index
    %7 = vector.load %arg8[%c0_9, %c32_10] : memref<32x160xf32, #tpu.memory_space<vmem>>, vector<32x32xf32>
    tpu.vector_store %arg8[%c0_9, %c32_10], %6 {strides = array<i32>} : memref<32x160xf32, #tpu.memory_space<vmem>>, vector<32x32xf32>,
    %c2 = arith.constant 2 : index
    %c0_11 = arith.constant 0 : index
    %8 = vector.load %arg7[%c2, %c0_11] : memref<40x32xf32, #tpu.memory_space<vmem>>, vector<32x32xf32>
    %c0_12 = arith.constant 0 : index
    %c64 = arith.constant 64 : index
    %9 = vector.load %arg8[%c0_12, %c64] : memref<32x160xf32, #tpu.memory_space<vmem>>, vector<32x32xf32>
    tpu.vector_store %arg8[%c0_12, %c64], %8 {strides = array<i32>} : memref<32x160xf32, #tpu.memory_space<vmem>>, vector<32x32xf32>,
    %c3 = arith.constant 3 : index
    %c0_13 = arith.constant 0 : index
    %10 = vector.load %arg7[%c3, %c0_13] : memref<40x32xf32, #tpu.memory_space<vmem>>, vector<32x32xf32>
    %c0_14 = arith.constant 0 : index
    %c96 = arith.constant 96 : index
    %11 = vector.load %arg8[%c0_14, %c96] : memref<32x160xf32, #tpu.memory_space<vmem>>, vector<32x32xf32>
    tpu.vector_store %arg8[%c0_14, %c96], %10 {strides = array<i32>} : memref<32x160xf32, #tpu.memory_space<vmem>>, vector<32x32xf32>,
    %c4 = arith.constant 4 : index
    %c0_15 = arith.constant 0 : index
    %12 = vector.load %arg7[%c4, %c0_15] : memref<40x32xf32, #tpu.memory_space<vmem>>, vector<32x32xf32>
    %c0_16 = arith.constant 0 : index
    %c128 = arith.constant 128 : index
    %13 = vector.load %arg8[%c0_16, %c128] : memref<32x160xf32, #tpu.memory_space<vmem>>, vector<32x32xf32>
    tpu.vector_store %arg8[%c0_16, %c128], %12 {strides = array<i32>} : memref<32x160xf32, #tpu.memory_space<vmem>>, vector<32x32xf32>,
    %c0_17 = arith.constant 0 : index
    %c0_18 = arith.constant 0 : index
    %14 = vector.load %arg8[%c0_17, %c0_18] : memref<32x160xf32, #tpu.memory_space<vmem>>, vector<32x160xf32>
    %c0_19 = arith.constant 0 : index
    %c0_20 = arith.constant 0 : index
    %15 = vector.load %arg2[%c0_19, %c0_20] : memref<160x128xf32, #tpu.memory_space<vmem>>, vector<160x128xf32>
    %cst_21 = arith.constant dense<0.000000e+00> : vector<32x128xf32>
    %16 = tpu.matmul %14, %15, %cst_21 {dimension_numbers = #tpu.dot_dimension_numbers<[1], [0], [0], [1], [0, 0, 1, 1], [], []>} : vector<32x160xf32>, vector<160x128xf32>, vector<32x128xf32> -> vector<32x128xf32>
    %c0_22 = arith.constant 0 : index
    %c0_23 = arith.constant 0 : index
    %17 = vector.load %arg3[%c0_22, %c0_23] : memref<1x128xf32, #tpu.memory_space<vmem>>, vector<1x128xf32>
    %18 = vector.broadcast %17 : vector<1x128xf32> to vector<32x128xf32>
    %19 = arith.addf %16, %18 : vector<32x128xf32>
    %cst_24 = arith.constant 0.000000e+00 : f32
    %20 = vector.broadcast %cst_24 : f32 to vector<32x128xf32>
    %21 = arith.maximumf %19, %20 : vector<32x128xf32>
    %22 = tpu.iota {dimensions = array<i32: 0>} : vector<16x128xi32>
    %23 = tpu.iota {dimensions = array<i32: 1>} : vector<16x128xi32>
    %c0_i32 = arith.constant 0 : i32
    %24 = vector.broadcast %c0_i32 : i32 to vector<16x128xi32>
    %c0_i32_25 = arith.constant 0 : i32
    %25 = vector.broadcast %c0_i32_25 : i32 to vector<16x128xi32>
    %26 = arith.cmpi sge, %23, %25 : vector<16x128xi32>
    %c8_i32 = arith.constant 8 : i32
    %27 = vector.broadcast %c8_i32 : i32 to vector<16x128xi32>
    %28 = arith.cmpi slt, %23, %27 : vector<16x128xi32>
    %29 = arith.andi %26, %28 : vector<16x128xi1>
    %c14_i32 = arith.constant 14 : i32
    %30 = vector.broadcast %c14_i32 : i32 to vector<16x128xi32>
    %31 = arith.select %29, %30, %24 : vector<16x128xi1>, vector<16x128xi32>
    %c8_i32_26 = arith.constant 8 : i32
    %32 = vector.broadcast %c8_i32_26 : i32 to vector<16x128xi32>
    %33 = arith.cmpi sge, %23, %32 : vector<16x128xi32>
    %c16_i32 = arith.constant 16 : i32
    %34 = vector.broadcast %c16_i32 : i32 to vector<16x128xi32>
    %35 = arith.cmpi slt, %23, %34 : vector<16x128xi32>
    %36 = arith.andi %33, %35 : vector<16x128xi1>
    %c13_i32 = arith.constant 13 : i32
    %37 = vector.broadcast %c13_i32 : i32 to vector<16x128xi32>
    %38 = arith.select %36, %37, %31 : vector<16x128xi1>, vector<16x128xi32>
    %c16_i32_27 = arith.constant 16 : i32
    %39 = vector.broadcast %c16_i32_27 : i32 to vector<16x128xi32>
    %40 = arith.cmpi sge, %23, %39 : vector<16x128xi32>
    %c24_i32 = arith.constant 24 : i32
    %41 = vector.broadcast %c24_i32 : i32 to vector<16x128xi32>
    %42 = arith.cmpi slt, %23, %41 : vector<16x128xi32>
    %43 = arith.andi %40, %42 : vector<16x128xi1>
    %c12_i32 = arith.constant 12 : i32
    %44 = vector.broadcast %c12_i32 : i32 to vector<16x128xi32>
    %45 = arith.select %43, %44, %38 : vector<16x128xi1>, vector<16x128xi32>
    %46 = arith.cmpi slt, %22, %45 : vector<16x128xi32>
    %47 = arith.extui %46 : vector<16x128xi1> to vector<16x128xi32>
    %48 = arith.sitofp %47 : vector<16x128xi32> to vector<16x128xf32>
    %49 = vector.shape_cast %21 : vector<32x128xf32> to vector<2x16x128xf32>
    %50 = vector.shape_cast %48 : vector<16x128xf32> to vector<1x16x128xf32>
    %51 = vector.broadcast %50 : vector<1x16x128xf32> to vector<2x16x128xf32>
    %52 = arith.mulf %49, %51 : vector<2x16x128xf32>
    %cst_28 = arith.constant dense<0xFF800000> : vector<2x128xf32>
    %53 = vector.multi_reduction <maximumf>, %52, %cst_28 [1] : vector<2x16x128xf32> to vector<2x128xf32>
    %c0_29 = arith.constant 0 : index
    %c0_30 = arith.constant 0 : index
    %54 = vector.load %arg4[%c0_29, %c0_30] : memref<128x4xf32, #tpu.memory_space<vmem>>, vector<128x4xf32>
    %cst_31 = arith.constant dense<0.000000e+00> : vector<2x4xf32>
    %55 = tpu.matmul %53, %54, %cst_31 {dimension_numbers = #tpu.dot_dimension_numbers<[1], [0], [0], [1], [0, 0, 1, 1], [], []>} : vector<2x128xf32>, vector<128x4xf32>, vector<2x4xf32> -> vector<2x4xf32>
    %c0_32 = arith.constant 0 : index
    %c0_33 = arith.constant 0 : index
    %56 = vector.load %arg5[%c0_32, %c0_33] : memref<1x4xf32, #tpu.memory_space<vmem>>, vector<1x4xf32>
    %57 = vector.broadcast %56 : vector<1x4xf32> to vector<2x4xf32>
    %58 = arith.addf %55, %57 : vector<2x4xf32>
    %c0_34 = arith.constant 0 : index
    %c0_35 = arith.constant 0 : index
    %59 = vector.load %arg6[%c0_34, %c0_35] : memref<2x4xf32, #tpu.memory_space<vmem>>, vector<2x4xf32>
    tpu.vector_store %arg6[%c0_34, %c0_35], %58 {strides = array<i32>} : memref<2x4xf32, #tpu.memory_space<vmem>>, vector<2x4xf32>,
    return
  }
  func.func @transform_0(%arg0: i32) -> (i32, i32) {
    %c0_i32 = arith.constant 0 : i32
    %c0_i32_0 = arith.constant 0 : i32
    %c0_i32_1 = arith.constant 0 : i32
    return %c0_i32, %c0_i32_0 : i32, i32
  }
  func.func @transform_1(%arg0: i32) -> (i32, i32) {
    %c0_i32 = arith.constant 0 : i32
    %c0_i32_0 = arith.constant 0 : i32
    %c0_i32_1 = arith.constant 0 : i32
    return %c0_i32, %c0_i32_0 : i32, i32
  }
  func.func @transform_2(%arg0: i32) -> (i32, i32) {
    %c0_i32 = arith.constant 0 : i32
    %c0_i32_0 = arith.constant 0 : i32
    %c0_i32_1 = arith.constant 0 : i32
    return %c0_i32, %c0_i32_0 : i32, i32
  }
  func.func @transform_3(%arg0: i32) -> (i32, i32) {
    %c0_i32 = arith.constant 0 : i32
    %c0_i32_0 = arith.constant 0 : i32
    %c0_i32_1 = arith.constant 0 : i32
    return %c0_i32, %c0_i32_0 : i32, i32
  }
  func.func @transform_4(%arg0: i32) -> (i32, i32) {
    %c0_i32 = arith.constant 0 : i32
    %c0_i32_0 = arith.constant 0 : i32
    %c0_i32_1 = arith.constant 0 : i32
    return %c0_i32, %c0_i32_0 : i32, i32
  }
  func.func @transform_5(%arg0: i32) -> (i32, i32) {
    %c0_i32 = arith.constant 0 : i32
    %c0_i32_0 = arith.constant 0 : i32
    %c0_i32_1 = arith.constant 0 : i32
    return %c0_i32, %c0_i32_0 : i32, i32
  }
}

</mosaic_0001>

<llo_original>
// kernel: tpu_custom_call.1
$region0: #{tpu_custom_call.1}
  #allocation0 [shape = 'u32[]', space=smem, size = 0x4, offset = 0x4, fixed_abs, tag = 'smem constant byte address 0x4 - core index']
  #allocation1 [shape = 'u32[72,128]{1,0:T(1,128)}', space=vmem, size = 0x9000, scoped, tag = 'internal scratch']
  #allocation2 [shape = 'f32[40,32]{1,0:T(8,128)}', space=vmem, size = 0x5000, scoped, tag = 'scratch operand']
  #allocation3 [shape = 'f32[32,160]{1,0:T(8,128)}', space=vmem, size = 0x8000, scoped, tag = 'scratch operand']
  %s0 = inlined_call_operand.vmem [shape: f32[32,32], index: 0, kind: input, shape index: {}]
  %s1 = inlined_call_operand.hbm [shape: f32[160,128], index: 1, kind: input, shape index: {}]
  %s2 = inlined_call_operand.vmem [shape: f32[1,128], index: 2, kind: input, shape index: {}]
  %s3 = inlined_call_operand.vmem [shape: f32[128,4], index: 3, kind: input, shape index: {}]
  %s4 = inlined_call_operand.vmem [shape: f32[1,4], index: 4, kind: input, shape index: {}]
  %s5 = inlined_call_operand.hbm [shape: f32[2,4], index: 5, kind: output, shape index: {}]
  %s6 = sld [smem:[#allocation0]]
  $region34: #{tpu_custom_call.1} parent=0
    _
  %s8 = ssub.s32 1, %s6
  %s9 = scalar_select 0, %s8, %s6
  $region1: #{tpu_custom_call.1} parent=0
    #allocation4 [shape = 'u8[81920]{0}', space=vmem, size = 0x14000, scoped, tag = 'input window, operand 1, single buffered']
    #allocation5 [shape = 's32[1]{0}', space=sflag, size = 0x4, scoped, tag = 'scoped memory for tpu_custom_call.1']
    #allocation6 [shape = 's32[1]{0}', space=sflag, size = 0x4, scoped, tag = 'scoped memory for tpu_custom_call.1']
    #allocation7 [shape = 'u8[1024]{0}', space=vmem, size = 0x400, scoped, tag = 'output window, operand 0, single buffered']
    %10 = vsyncpa [#allocation5], 0
    %11 = vsyncpa [#allocation6], 0
    // Predicated region
    $region2: #{tpu_custom_call.1} parent=1 // pred_check
      _
    $region3: #{tpu_custom_call.1} parent=1 // pred_check_branch
      %13 = sbr.rel (0) target = $region5
    $region4: #{tpu_custom_call.1} parent=1 // pred_region
      _
    $region5: #{tpu_custom_call.1} parent=1 // pred_fallthru
      _
    // Predicated region
    $region6: #{tpu_custom_call.1} parent=1 // pred_check
      _
    $region7: #{tpu_custom_call.1} parent=1 // pred_check_branch
      %15 = sbr.rel (0) target = $region9
    $region8: #{tpu_custom_call.1} parent=1 // pred_region
      %17 = vsyncadd [#allocation5], 0
      %s18 = sshll.u32 %s1, 4
      %s19 = int_to_ptr.hbm [resolvable:$true] %s18
      %s20 = sshll.u32 [#allocation4], 4
      %s21 = int_to_ptr.vmem [resolvable:$true] %s20
      %26 = dma.hbm_to_vmem [thread:$0]  %s19, 2560, %s21, [#allocation5], 128, 128, 8
    $region9: #{tpu_custom_call.1} parent=1 // pred_fallthru
      _
    // Predicated region
    $region10: #{tpu_custom_call.1} parent=1 // pred_check
      _
    $region11: #{tpu_custom_call.1} parent=1 // pred_check_branch
      %28 = sbr.rel (0) target = $region13
    $region12: #{tpu_custom_call.1} parent=1 // pred_region
      _
    $region13: #{tpu_custom_call.1} parent=1 // pred_fallthru
      _
    // Predicated region
    $region14: #{tpu_custom_call.1} parent=1 // pred_check
      _
    $region15: #{tpu_custom_call.1} parent=1 // pred_check_branch
      %30 = sbr.rel (0) target = $region17
    $region16: #{tpu_custom_call.1} parent=1 // pred_region
      _
    $region17: #{tpu_custom_call.1} parent=1 // pred_fallthru
      _
    // Predicated region
    $region18: #{tpu_custom_call.1} parent=1 // pred_check
      _
    $region19: #{tpu_custom_call.1} parent=1 // pred_check_branch
      %32 = sbr.rel (0) target = $region21
    $region20: #{tpu_custom_call.1} parent=1 // pred_region
      _
    $region21: #{tpu_custom_call.1} parent=1 // pred_fallthru
      _
    // Predicated region
    $region22: #{tpu_custom_call.1} parent=1 // pred_check
      _
    $region23: #{tpu_custom_call.1} parent=1 // pred_check_branch
      %34 = sbr.rel (0) target = $region25
    $region24: #{tpu_custom_call.1} parent=1 // pred_region
      %36 = dma.done [#allocation5], 2560
    $region25: #{tpu_custom_call.1} parent=1 // pred_fallthru
      _
    %vm37 = vcmask 261120
    %38 = vst.msk [vmem:[#allocation2 + $0x20] sm:$0xff] %vm37, 0.0
    %v39 = vld [vmem:[%s0] sm:$0xff]
    %v40 = vld [vmem:[%s0 + $0x8] sm:$0xff]
    %v41 = vld [vmem:[%s0 + $0x10] sm:$0xff]
    %v42 = vld [vmem:[%s0 + $0x18] sm:$0xff]
    %43 = vst.msk [vmem:[#allocation2] sm:$0xff] %vm37, %v39
    %44 = vst.msk [vmem:[#allocation2 + $0x8] sm:$0xff] %vm37, %v40
    %45 = vst.msk [vmem:[#allocation2 + $0x10] sm:$0xff] %vm37, %v41
    %46 = vst.msk [vmem:[#allocation2 + $0x18] sm:$0xff] %vm37, %v42
    %v47 = vld [vmem:[#allocation2] sm:$0xff]
    %v48 = vld [vmem:[#allocation2 + $0x8] sm:$0xff]
    %v49 = vld [vmem:[#allocation2 + $0x10] sm:$0xff]
    %v50 = vld [vmem:[#allocation2 + $0x18] sm:$0xff]
    %51 = vst.msk [vmem:[#allocation3] sm:$0xff] %vm37, %v47
    %52 = vst.msk [vmem:[#allocation3 + $0x10] sm:$0xff] %vm37, %v48
    %53 = vst.msk [vmem:[#allocation3 + $0x20] sm:$0xff] %vm37, %v49
    %54 = vst.msk [vmem:[#allocation3 + $0x30] sm:$0xff] %vm37, %v50
    %v55 = vld [vmem:[#allocation2 + $0x1] sm:$0xff]
    %v56 = vld [vmem:[#allocation2 + $0x9] sm:$0xff]
    %v57 = vld [vmem:[#allocation2 + $0x11] sm:$0xff]
    %v58 = vld [vmem:[#allocation2 + $0x19] sm:$0xff]
    %63 = vrot.lane.b32.xlu0 %v55, 32
    %v64 = vpop.permute.xlu0 %63
    %65 = vrot.lane.b32.xlu0 %v56, 32
    %v66 = vpop.permute.xlu0 %65
    %67 = vrot.lane.b32.xlu0 %v57, 32
    %v68 = vpop.permute.xlu0 %67
    %69 = vrot.lane.b32.xlu0 %v58, 32
    %v70 = vpop.permute.xlu0 %69
    %vm75 = vcmask 523520
    %76 = vst.msk [vmem:[#allocation3] sm:$0xff] %vm75, %v64
    %77 = vst.msk [vmem:[#allocation3 + $0x10] sm:$0xff] %vm75, %v66
    %78 = vst.msk [vmem:[#allocation3 + $0x20] sm:$0xff] %vm75, %v68
    %79 = vst.msk [vmem:[#allocation3 + $0x30] sm:$0xff] %vm75, %v70
    %v80 = vld [vmem:[#allocation2 + $0x2] sm:$0xff]
    %v81 = vld [vmem:[#allocation2 + $0xa] sm:$0xff]
    %v82 = vld [vmem:[#allocation2 + $0x12] sm:$0xff]
    %v83 = vld [vmem:[#allocation2 + $0x1a] sm:$0xff]
    %88 = vrot.lane.b32.xlu0 %v80, 64
    %v89 = vpop.permute.xlu0 %88
    %90 = vrot.lane.b32.xlu0 %v81, 64
    %v91 = vpop.permute.xlu0 %90
    %92 = vrot.lane.b32.xlu0 %v82, 64
    %v93 = vpop.permute.xlu0 %92
    %94 = vrot.lane.b32.xlu0 %v83, 64
    %v95 = vpop.permute.xlu0 %94
    %vm100 = vcmask 785920
    %101 = vst.msk [vmem:[#allocation3] sm:$0xff] %vm100, %v89
    %102 = vst.msk [vmem:[#allocation3 + $0x10] sm:$0xff] %vm100, %v91
    %103 = vst.msk [vmem:[#allocation3 + $0x20] sm:$0xff] %vm100, %v93
    %104 = vst.msk [vmem:[#allocation3 + $0x30] sm:$0xff] %vm100, %v95
    %v105 = vld [vmem:[#allocation2 + $0x3] sm:$0xff]
    %v106 = vld [vmem:[#allocation2 + $0xb] sm:$0xff]
    %v107 = vld [vmem:[#allocation2 + $0x13] sm:$0xff]
    %v108 = vld [vmem:[#allocation2 + $0x1b] sm:$0xff]
    %113 = vrot.lane.b32.xlu0 %v105, 96
    %v114 = vpop.permute.xlu0 %113
    %115 = vrot.lane.b32.xlu0 %v106, 96
    %v116 = vpop.permute.xlu0 %115
    %117 = vrot.lane.b32.xlu0 %v107, 96
    %v118 = vpop.permute.xlu0 %117
    %119 = vrot.lane.b32.xlu0 %v108, 96
    %v120 = vpop.permute.xlu0 %119
    %vm125 = vcmask 1048320
    %126 = vst.msk [vmem:[#allocation3] sm:$0xff] %vm125, %v114
    %127 = vst.msk [vmem:[#allocation3 + $0x10] sm:$0xff] %vm125, %v116
    %128 = vst.msk [vmem:[#allocation3 + $0x20] sm:$0xff] %vm125, %v118
    %129 = vst.msk [vmem:[#allocation3 + $0x30] sm:$0xff] %vm125, %v120
    %v130 = vld [vmem:[#allocation2 + $0x4] sm:$0xff]
    %v131 = vld [vmem:[#allocation2 + $0xc] sm:$0xff]
    %v132 = vld [vmem:[#allocation2 + $0x14] sm:$0xff]
    %v133 = vld [vmem:[#allocation2 + $0x1c] sm:$0xff]
    %134 = vst.msk [vmem:[#allocation3 + $0x8] sm:$0xff] %vm37, %v130
    %135 = vst.msk [vmem:[#allocation3 + $0x18] sm:$0xff] %vm37, %v131
    %136 = vst.msk [vmem:[#allocation3 + $0x28] sm:$0xff] %vm37, %v132
    %137 = vst.msk [vmem:[#allocation3 + $0x38] sm:$0xff] %vm37, %v133
    %v138 = vld [vmem:[#allocation3] sm:$0xff]
    %v139 = vld [vmem:[#allocation3 + $0x8] sm:$0xff]
    %v140 = vld [vmem:[#allocation3 + $0x10] sm:$0xff]
    %v141 = vld [vmem:[#allocation3 + $0x18] sm:$0xff]
    %v142 = vld [vmem:[#allocation3 + $0x20] sm:$0xff]
    %v143 = vld [vmem:[#allocation3 + $0x28] sm:$0xff]
    %v144 = vld [vmem:[#allocation3 + $0x30] sm:$0xff]
    %v145 = vld [vmem:[#allocation3 + $0x38] sm:$0xff]
    %v146 = vld [vmem:[#allocation4] sm:$0xff]
    %v147 = vld [vmem:[#allocation4 + $0x8] sm:$0xff]
    %v148 = vld [vmem:[#allocation4 + $0x10] sm:$0xff]
    %v149 = vld [vmem:[#allocation4 + $0x18] sm:$0xff]
    %v150 = vld [vmem:[#allocation4 + $0x20] sm:$0xff]
    %v151 = vld [vmem:[#allocation4 + $0x28] sm:$0xff]
    %v152 = vld [vmem:[#allocation4 + $0x30] sm:$0xff]
    %v153 = vld [vmem:[#allocation4 + $0x38] sm:$0xff]
    %v154 = vld [vmem:[#allocation4 + $0x40] sm:$0xff]
    %v155 = vld [vmem:[#allocation4 + $0x48] sm:$0xff]
    %v156 = vld [vmem:[#allocation4 + $0x50] sm:$0xff]
    %v157 = vld [vmem:[#allocation4 + $0x58] sm:$0xff]
    %v158 = vld [vmem:[#allocation4 + $0x60] sm:$0xff]
    %v159 = vld [vmem:[#allocation4 + $0x68] sm:$0xff]
    %v160 = vld [vmem:[#allocation4 + $0x70] sm:$0xff]
    %v161 = vld [vmem:[#allocation4 + $0x78] sm:$0xff]
    %v162 = vld [vmem:[#allocation4 + $0x80] sm:$0xff]
    %v163 = vld [vmem:[#allocation4 + $0x88] sm:$0xff]
    %v164 = vld [vmem:[#allocation4 + $0x90] sm:$0xff]
    %v165 = vld [vmem:[#allocation4 + $0x98] sm:$0xff]
    %v166 = vld [vmem:[%s2] sm:$0x1]
    %v168 = vperm.slane %v166, 0
    %v171 = vsel %vm37, %v139, 0
    %v174 = vsel %vm37, %v141, 0
    %v177 = vsel %vm37, %v143, 0
    %v180 = vsel %vm37, %v145, 0
    %182 = vmatpush.msra.mxu0 %v161
    %183 = vmatpush.msra.mxu0 %v160
    %184 = vmatpush.msra.mxu0 %v159
    %185 = vmatpush.msra.mxu0 %v158
    %186 = vmatpush.msra.mxu0 %v157
    %187 = vmatpush.msra.mxu0 %v156
    %188 = vmatpush.msra.mxu0 %v155
    %189 = vmatpush.msra.mxu0 %v154
    %190 = vmatpush.msra.mxu0 %v153
    %191 = vmatpush.msra.mxu0 %v152
    %192 = vmatpush.msra.mxu0 %v151
    %193 = vmatpush.msra.mxu0 %v150
    %194 = vmatpush.msra.mxu0 %v149
    %195 = vmatpush.msra.mxu0 %v148
    %196 = vmatpush.msra.mxu0 %v147
    %197 = vmatpush.msra.mxu0 %v146
    %198 = vmatmul.f32.gmra.mxu0 %v138
    %v199 = vpop.f32.mrf.mxu0
    %v200 = vadd.f32 %v168, %v199
    %201 = vmatmul.f32.gmra.mxu0 %v140
    %v202 = vpop.f32.mrf.mxu0
    %v203 = vadd.f32 %v168, %v202
    %204 = vmatmul.f32.gmra.mxu0 %v142
    %v205 = vpop.f32.mrf.mxu0
    %v206 = vadd.f32 %v168, %v205
    %207 = vmatmul.f32.gmra.mxu0 %v144
    %v208 = vpop.f32.mrf.mxu0
    %v209 = vadd.f32 %v168, %v208
    %210 = vdwg.mxu0
    %211 = vmatpush.msra.mxu0 0.0
    %212 = vmatpush.msra.mxu0 0.0
    %213 = vmatpush.msra.mxu0 0.0
    %214 = vmatpush.msra.mxu0 0.0
    %215 = vmatpush.msra.mxu0 0.0
    %216 = vmatpush.msra.mxu0 0.0
    %217 = vmatpush.msra.mxu0 0.0
    %218 = vmatpush.msra.mxu0 0.0
    %219 = vmatpush.msra.mxu0 0.0
    %220 = vmatpush.msra.mxu0 0.0
    %221 = vmatpush.msra.mxu0 0.0
    %222 = vmatpush.msra.mxu0 0.0
    %223 = vmatpush.msra.mxu0 %v165
    %224 = vmatpush.msra.mxu0 %v164
    %225 = vmatpush.msra.mxu0 %v163
    %226 = vmatpush.msra.mxu0 %v162
    %227 = vmatmul.f32.gmra.mxu0 %v171
    %v228 = vpop.f32.mrf.mxu0
    %v229 = vadd.f32 %v200, %v228
    %230 = vmatmul.f32.gmra.mxu0 %v174
    %v231 = vpop.f32.mrf.mxu0
    %v232 = vadd.f32 %v203, %v231
    %233 = vmatmul.f32.gmra.mxu0 %v177
    %v234 = vpop.f32.mrf.mxu0
    %v235 = vadd.f32 %v206, %v234
    %236 = vmatmul.f32.gmra.mxu0 %v180
    %v237 = vpop.f32.mrf.mxu0
    %v238 = vadd.f32 %v209, %v237
    %239 = vdwg.mxu0
    %v240 = vmax.f32 %v229, 0.0
    %v241 = vmax.f32 %v232, 0.0
    %v242 = vmax.f32 %v235, 0.0
    %v243 = vmax.f32 %v238, 0.0
    %v244 = vlaneseq
    %v245 = vshrl.u32 %v244, 7
    %v246 = vadd.s32 %v245, 8
    %v247 = vlaneseq
    %v248 = vand.u32 %v247, 127
    %vm249 = vcmp.ge.s32.totalorder %v248, 0
    %vm250 = vcmp.lt.s32.totalorder %v248, 8
    %vm251 = vmand %vm249, %vm250
    %v252 = vsel %vm251, 14, 0
    %vm253 = vcmp.ge.s32.totalorder %v248, 8
    %vm254 = vcmp.lt.s32.totalorder %v248, 16
    %vm255 = vmand %vm253, %vm254
    %v256 = vsel %vm255, 13, %v252
    %vm257 = vcmp.ge.s32.totalorder %v248, 16
    %vm258 = vcmp.lt.s32.totalorder %v248, 24
    %vm259 = vmand %vm257, %vm258
    %v260 = vsel %vm259, 12, %v256
    %vm261 = vcmp.lt.s32.totalorder %v245, %v260
    %vm262 = vcmp.lt.s32.totalorder %v246, %v260
    %v263 = vsel %vm261, 1, 0
    %v264 = vsel %vm262, 1, 0
    %v265 = vcvt.s32.f32 %v263
    %v266 = vcvt.s32.f32 %v264
    %v267 = vmul.f32 %v240, %v265
    %v268 = vmul.f32 %v241, %v266
    %v269 = vmul.f32 %v242, %v265
    %v270 = vmul.f32 %v243, %v266
    %v271 = vmax.f32 %v267, %v268
    %v272 = vrot.slane %v271, 4
    %v273 = vmax.f32 %v271, %v272
    %v274 = vrot.slane %v273, 2
    %v275 = vmax.f32 %v273, %v274
    %v276 = vrot.slane %v275, 1
    %v277 = vmax.f32 %v275, %v276
    %v278 = vmax.f32 %v269, %v270
    %v279 = vrot.slane %v278, 4
    %v280 = vmax.f32 %v278, %v279
    %v281 = vrot.slane %v280, 2
    %v282 = vmax.f32 %v280, %v281
    %v283 = vrot.slane %v282, 1
    %v284 = vmax.f32 %v282, %v283
    %v285 = vld [vmem:[%s3] sm:$0xff]
    %v286 = vld [vmem:[%s3 + $0x8] sm:$0xff]
    %v287 = vld [vmem:[%s3 + $0x10] sm:$0xff]
    %v288 = vld [vmem:[%s3 + $0x18] sm:$0xff]
    %v289 = vld [vmem:[%s3 + $0x20] sm:$0xff]
    %v290 = vld [vmem:[%s3 + $0x28] sm:$0xff]
    %v291 = vld [vmem:[%s3 + $0x30] sm:$0xff]
    %v292 = vld [vmem:[%s3 + $0x38] sm:$0xff]
    %v293 = vld [vmem:[%s3 + $0x40] sm:$0xff]
    %v294 = vld [vmem:[%s3 + $0x48] sm:$0xff]
    %v295 = vld [vmem:[%s3 + $0x50] sm:$0xff]
    %v296 = vld [vmem:[%s3 + $0x58] sm:$0xff]
    %v297 = vld [vmem:[%s3 + $0x60] sm:$0xff]
    %v298 = vld [vmem:[%s3 + $0x68] sm:$0xff]
    %v299 = vld [vmem:[%s3 + $0x70] sm:$0xff]
    %v300 = vld [vmem:[%s3 + $0x78] sm:$0xff]
    %v301 = vld [vmem:[%s4] sm:$0x1]
    %v303 = vperm.slane %v301, 0
    %vm307 = vcmask 1041409
    %v308 = vsel %vm307, %v284, %v277
    %310 = vmatpush.msra.mxu0 %v300
    %311 = vmatpush.msra.mxu0 %v299
    %312 = vmatpush.msra.mxu0 %v298
    %313 = vmatpush.msra.mxu0 %v297
    %314 = vmatpush.msra.mxu0 %v296
    %315 = vmatpush.msra.mxu0 %v295
    %316 = vmatpush.msra.mxu0 %v294
    %317 = vmatpush.msra.mxu0 %v293
    %318 = vmatpush.msra.mxu0 %v292
    %319 = vmatpush.msra.mxu0 %v291
    %320 = vmatpush.msra.mxu0 %v290
    %321 = vmatpush.msra.mxu0 %v289
    %322 = vmatpush.msra.mxu0 %v288
    %323 = vmatpush.msra.mxu0 %v287
    %324 = vmatpush.msra.mxu0 %v286
    %325 = vmatpush.msra.mxu0 %v285
    %326 = vmatmul.f32.gmra.mxu0 %v308
    %v327 = vpop.f32.mrf.mxu0
    %v328 = vadd.f32 %v303, %v327
    %329 = vdwg.mxu0
    %vm330 = vcmask 25600
    %331 = vst.msk [vmem:[#allocation7] sm:$0x3] %vm330, %v328
    // Predicated region
    $region26: #{tpu_custom_call.1} parent=1 // pred_check
      _
    $region27: #{tpu_custom_call.1} parent=1 // pred_check_branch
      %333 = sbr.rel (0) target = $region29
    $region28: #{tpu_custom_call.1} parent=1 // pred_region
      %335 = vsyncadd [#allocation6], 0
      %s337 = sshll.u32 [#allocation7], 4
      %s338 = int_to_ptr.vmem [resolvable:$true] %s337
      %s339 = sshll.u32 %s5, 4
      %s340 = int_to_ptr.hbm [resolvable:$true] %s339
      %342 = dma.vmem_to_hbm [thread:$0]  %s338, 32, %s340, [#allocation6]
    $region29: #{tpu_custom_call.1} parent=1 // pred_fallthru
      _
    // Predicated region
    $region30: #{tpu_custom_call.1} parent=1 // pred_check
      _
    $region31: #{tpu_custom_call.1} parent=1 // pred_check_branch
      %344 = sbr.rel (0) target = $region33
    $region32: #{tpu_custom_call.1} parent=1 // pred_region
      %346 = dma.done [#allocation6], 32
    $region33: #{tpu_custom_call.1} parent=1 // pred_fallthru
      _
    %347 = vsyncpa [#allocation5], 1
    %348 = vsyncpa [#allocation6], 1

</llo_original>
